<compile_context>
chip_gen: v7x
topology: tpu7x:2x2x1
jax: 0.10.0
libtpu: 0.0.40
codegen_flags: <defaults>
</compile_context>

<pallas_src>
import functools

import jax
import jax.numpy as jnp
from jax.experimental import pallas as pl
from jax.experimental.pallas import tpu as pltpu

_LANE = 128
_SUBLANE = 8


def _matchlstm_head_kernel(x_ref, w_ref, b_ref, out_ref):
    # x_ref   : [tm, H]     CLS-token embeddings (strided-DMA'd straight out of
    #                       the [B, S, H] encoder output; token 0 only)
    # w_ref   : [H, C_pad]  fc weight, pre-transposed + lane-padded (resident)
    # b_ref   : [1, C_pad]  fc bias, lane-padded (resident)
    # out_ref : [tm, C_pad] lane-dense logits
    # dropout_emb is identity at inference, so no masking here.
    out_ref[...] = (
        jnp.dot(x_ref[...], w_ref[...], preferred_element_type=jnp.float32)
        + b_ref[...]
    ).astype(out_ref.dtype)


def prepare_fc_params(fc_w, fc_b):
    """Transpose + lane-pad the fc parameters ONCE (model-load time).

    fc_w: [C, H], fc_b: [C]  ->  w_t: [H, C_pad], b_p: [1, C_pad]
    """
    C, H = fc_w.shape
    C_pad = pl.cdiv(C, _LANE) * _LANE            # 128 for C=4 (lane-dense stores)
    w_t = jnp.transpose(fc_w)                    # [H, C] — hoisted out of the call path
    if C_pad > C:
        w_t = jnp.pad(w_t, ((0, 0), (0, C_pad - C)))
        b_p = jnp.pad(fc_b, (0, C_pad - C))
    else:
        b_p = fc_b
    return w_t, b_p.reshape(1, C_pad)


def _choose_tile(B, max_tm=1024):
    """Largest batch tile <= max_tm (safe for v5e's 16 MiB scoped VMEM with
    double buffering), keeping >= 2 grid steps when the batch allows it so
    both v7x TensorCores are used by the 'parallel' axis."""
    if B <= 2 * _SUBLANE:
        return B                                  # tiny batch: one full-extent tile
    two_way = (B // 2) // _SUBLANE * _SUBLANE     # >= 2 tiles, sublane-aligned
    return min(max_tm, max(two_way, _SUBLANE))


def matchlstm_head(pair_emb, w_t, b_p, *, max_block_b=1024, out_dtype=jnp.float32):
    """pair_emb: [B, S, H] encoder output, w_t: [H, C_pad], b_p: [1, C_pad]
    -> logits [B, C_pad] (caller slices to [:, :C])."""
    B, S, H = pair_emb.shape
    C_pad = w_t.shape[1]

    # Metadata-only reshape (contiguous row-major bitcast): a (tm, H) block at
    # column-block 0 of [B, S*H] is exactly the CLS token of each row, so the
    # Pallas pipeline issues a strided HBM read of only that slab.
    pair_flat = pair_emb.reshape(B, S * H)

    tm = _choose_tile(B, max_block_b)
    grid_b = pl.cdiv(B, tm)                       # ragged tail masked by Pallas

    x_bytes = jnp.dtype(pair_emb.dtype).itemsize
    w_bytes = jnp.dtype(w_t.dtype).itemsize
    o_bytes = jnp.dtype(out_dtype).itemsize

    return pl.pallas_call(
        _matchlstm_head_kernel,
        out_shape=jax.ShapeDtypeStruct((B, C_pad), out_dtype),
        grid_spec=pltpu.PrefetchScalarGridSpec(
            num_scalar_prefetch=0,
            grid=(grid_b,),
            in_specs=[
                pl.BlockSpec((tm, H), lambda i: (i, 0)),      # CLS slab rows
                pl.BlockSpec((H, C_pad), lambda i: (0, 0)),   # weight (resident)
                pl.BlockSpec((1, C_pad), lambda i: (0, 0)),   # bias (resident)
            ],
            out_specs=pl.BlockSpec((tm, C_pad), lambda i: (i, 0)),
        ),
        compiler_params=pltpu.CompilerParams(
            dimension_semantics=("parallel",),
        ),
        cost_estimate=pl.CostEstimate(
            flops=2 * B * H * C_pad,
            transcendentals=0,
            bytes_accessed=B * H * x_bytes + H * C_pad * w_bytes + B * C_pad * o_bytes,
        ),
    )(pair_flat, w_t, b_p)


@functools.partial(jax.jit, static_argnames=("num_classes",))
def matchlstm_forward(pair_emb, w_t, b_p, *, num_classes):
    """Inference head: BERT output [B, S, 768] -> logits [B, num_classes]."""
    out = matchlstm_head(pair_emb, w_t, b_p)
    return out[:, :num_classes]


def reference_forward(pair_emb, fc_w, fc_b):
    h = pair_emb[:, 0]                            # CLS token
    return h @ fc_w.T + fc_b


if __name__ == "__main__":
    # Small shapes consistent with the module: BERT hidden size must be 768.
    B, S, H = 2, 8, 768
    NUM_CLASSES = 4

    key = jax.random.PRNGKey(0)
    k_pair, k_w, k_b = jax.random.split(key, 3)

    # Synthetic "BERT output" contextual embeddings.
    pair_emb = jax.random.normal(k_pair, (B, S, H), dtype=jnp.float32)

    # fc_bert = nn.Linear(768, num_classes); default init uniform(+-1/sqrt(768)).
    bound = 1.0 / jnp.sqrt(jnp.float32(H))
    fc_w = jax.random.uniform(k_w, (NUM_CLASSES, H), jnp.float32, -bound, bound)
    fc_b = jax.random.uniform(k_b, (NUM_CLASSES,), jnp.float32, -bound, bound)

    # Parameter prep happens once, at "model load" time (not per call).
    w_t, b_p = jax.block_until_ready(prepare_fc_params(fc_w, fc_b))

    out = matchlstm_forward(pair_emb, w_t, b_p, num_classes=NUM_CLASSES)
    out = jax.block_until_ready(out)

    ref = reference_forward(pair_emb, fc_w, fc_b)
    assert out.shape == (B, NUM_CLASSES)
    assert jnp.allclose(out, ref, atol=1e-4, rtol=1e-4), (out, ref)

    print("KERNEL_OK")
</pallas_src>

<mosaic_0001>
module attributes {stable_mosaic.version = 11 : i64} {
  func.func @_matchlstm_head_kernel(%arg0: i32, %arg1: memref<2x768xf32, #tpu.memory_space<vmem>>, %arg2: memref<768x128xf32, #tpu.memory_space<vmem>>, %arg3: memref<1x128xf32, #tpu.memory_space<vmem>>, %arg4: memref<2x128xf32, #tpu.memory_space<vmem>>) attributes {dimension_semantics = [#tpu.dimension_semantics<parallel>], iteration_bounds = array<i64: 1>, scalar_prefetch = 0 : i64, scratch_operands = 0 : i64, tpu.core_type = #tpu.core_type<tc>, window_params = [{transform_indices = @transform_0, window_bounds = array<i64: 2, 768>}, {pipeline_mode = #tpu.pipeline_mode<synchronous>, transform_indices = @transform_1, window_bounds = array<i64: 768, 128>}, {pipeline_mode = #tpu.pipeline_mode<synchronous>, transform_indices = @transform_2, window_bounds = array<i64: 1, 128>}, {transform_indices = @transform_3, window_bounds = array<i64: 2, 128>}]} {
    %c0 = arith.constant 0 : index
    %c0_0 = arith.constant 0 : index
    %0 = vector.load %arg1[%c0, %c0_0] : memref<2x768xf32, #tpu.memory_space<vmem>>, vector<2x768xf32>
    %c0_1 = arith.constant 0 : index
    %c0_2 = arith.constant 0 : index
    %1 = vector.load %arg2[%c0_1, %c0_2] : memref<768x128xf32, #tpu.memory_space<vmem>>, vector<768x128xf32>
    %cst = arith.constant dense<0.000000e+00> : vector<2x128xf32>
    %2 = tpu.matmul %0, %1, %cst {dimension_numbers = #tpu.dot_dimension_numbers<[1], [0], [0], [1], [0, 0, 1, 1], [], []>} : vector<2x768xf32>, vector<768x128xf32>, vector<2x128xf32> -> vector<2x128xf32>
    %c0_3 = arith.constant 0 : index
    %c0_4 = arith.constant 0 : index
    %3 = vector.load %arg3[%c0_3, %c0_4] : memref<1x128xf32, #tpu.memory_space<vmem>>, vector<1x128xf32>
    %4 = vector.broadcast %3 : vector<1x128xf32> to vector<2x128xf32>
    %5 = arith.addf %2, %4 : vector<2x128xf32>
    %c0_5 = arith.constant 0 : index
    %c0_6 = arith.constant 0 : index
    %6 = vector.load %arg4[%c0_5, %c0_6] : memref<2x128xf32, #tpu.memory_space<vmem>>, vector<2x128xf32>
    tpu.vector_store %arg4[%c0_5, %c0_6], %5 {strides = array<i32>} : memref<2x128xf32, #tpu.memory_space<vmem>>, vector<2x128xf32>,
    return
  }
  func.func @transform_0(%arg0: i32) -> (i32, i32) {
    %c0_i32 = arith.constant 0 : i32
    %c0_i32_0 = arith.constant 0 : i32
    return %arg0, %c0_i32 : i32, i32
  }
  func.func @transform_1(%arg0: i32) -> (i32, i32) {
    %c0_i32 = arith.constant 0 : i32
    %c0_i32_0 = arith.constant 0 : i32
    %c0_i32_1 = arith.constant 0 : i32
    return %c0_i32, %c0_i32_0 : i32, i32
  }
  func.func @transform_2(%arg0: i32) -> (i32, i32) {
    %c0_i32 = arith.constant 0 : i32
    %c0_i32_0 = arith.constant 0 : i32
    %c0_i32_1 = arith.constant 0 : i32
    return %c0_i32, %c0_i32_0 : i32, i32
  }
  func.func @transform_3(%arg0: i32) -> (i32, i32) {
    %c0_i32 = arith.constant 0 : i32
    %c0_i32_0 = arith.constant 0 : i32
    return %arg0, %c0_i32 : i32, i32
  }
}

</mosaic_0001>

<llo_original>
// kernel: matchlstm_forward.1
$region0: #{matchlstm_forward.1}
  #allocation0 [shape = 'u32[]', space=smem, size = 0x4, offset = 0x4, fixed_abs, tag = 'smem constant byte address 0x4 - core index']
  #allocation1 [shape = 'u32[144,128]{1,0:T(1,128)}', space=vmem, size = 0x12000, scoped, tag = 'internal scratch']
  %s0 = inlined_call_operand.vmem [shape: f32[2,6144], index: 0, kind: input, shape index: {}]
  %s1 = inlined_call_operand.hbm [shape: f32[768,128], index: 1, kind: input, shape index: {}]
  %s2 = inlined_call_operand.vmem [shape: f32[1,128], index: 2, kind: input, shape index: {}]
  %s3 = inlined_call_operand.hbm [shape: f32[2,128], index: 3, kind: output, shape index: {}]
  %s4 = sld [smem:[#allocation0]]
  $region26: #{matchlstm_forward.1} parent=0
    _
  %s6 = ssub.s32 1, %s4
  %s7 = scalar_select 0, %s6, %s4
  $region1: #{matchlstm_forward.1} parent=0
    #allocation2 [shape = 'u8[393216]{0}', space=vmem, size = 0x60000, scoped, tag = 'input window, operand 1, single buffered']
    #allocation3 [shape = 's32[1]{0}', space=sflag, size = 0x4, scoped, tag = 'scoped memory for matchlstm_forward.1']
    #allocation4 [shape = 's32[1]{0}', space=sflag, size = 0x4, scoped, tag = 'scoped memory for matchlstm_forward.1']
    #allocation5 [shape = 'u8[1024]{0}', space=vmem, size = 0x400, scoped, tag = 'output window, operand 0, single buffered']
    %8 = vsyncpa [#allocation3], 0
    %9 = vsyncpa [#allocation4], 0
    // Predicated region
    $region2: #{matchlstm_forward.1} parent=1 // pred_check
      _
    $region3: #{matchlstm_forward.1} parent=1 // pred_check_branch
      %11 = sbr.rel (0) target = $region5
    $region4: #{matchlstm_forward.1} parent=1 // pred_region
      _
    $region5: #{matchlstm_forward.1} parent=1 // pred_fallthru
      _
    // Predicated region
    $region6: #{matchlstm_forward.1} parent=1 // pred_check
      _
    $region7: #{matchlstm_forward.1} parent=1 // pred_check_branch
      %13 = sbr.rel (0) target = $region9
    $region8: #{matchlstm_forward.1} parent=1 // pred_region
      %s15 = ssub.s32 12288, 12288
      %16 = vsyncadd [#allocation3], %s15
      %s17 = sshll.u32 [#allocation2], 4
      %s18 = int_to_ptr.vmem [resolvable:$true] %s17
      %23 = dma.hbm_to_vmem [thread:$0]  %s1, 12288, %s18, [#allocation3], 128, 128, 8
    $region9: #{matchlstm_forward.1} parent=1 // pred_fallthru
      _
    // Predicated region
    $region10: #{matchlstm_forward.1} parent=1 // pred_check
      _
    $region11: #{matchlstm_forward.1} parent=1 // pred_check_branch
      %25 = sbr.rel (0) target = $region13
    $region12: #{matchlstm_forward.1} parent=1 // pred_region
      _
    $region13: #{matchlstm_forward.1} parent=1 // pred_fallthru
      _
    // Predicated region
    $region14: #{matchlstm_forward.1} parent=1 // pred_check
      _
    $region15: #{matchlstm_forward.1} parent=1 // pred_check_branch
      %27 = sbr.rel (0) target = $region17
    $region16: #{matchlstm_forward.1} parent=1 // pred_region
      %28 = dma.done [#allocation3], 12288
    $region17: #{matchlstm_forward.1} parent=1 // pred_fallthru
      _
    %v29 = vld [vmem:[%s0] sm:$0xff]
    %v30 = vld [vmem:[%s0 + $0x8] sm:$0xf]
    %v31 = vld [vmem:[#allocation2] sm:$0xff]
    %v32 = vld [vmem:[#allocation2 + $0x8] sm:$0xff]
    %v33 = vld [vmem:[#allocation2 + $0x10] sm:$0xff]
    %v34 = vld [vmem:[#allocation2 + $0x18] sm:$0xff]
    %v35 = vld [vmem:[#allocation2 + $0x20] sm:$0xff]
    %v36 = vld [vmem:[#allocation2 + $0x28] sm:$0xff]
    %v37 = vld [vmem:[#allocation2 + $0x30] sm:$0xff]
    %v38 = vld [vmem:[#allocation2 + $0x38] sm:$0xff]
    %v39 = vld [vmem:[#allocation2 + $0x40] sm:$0xff]
    %v40 = vld [vmem:[#allocation2 + $0x48] sm:$0xff]
    %v41 = vld [vmem:[#allocation2 + $0x50] sm:$0xff]
    %v42 = vld [vmem:[#allocation2 + $0x58] sm:$0xff]
    %v43 = vld [vmem:[#allocation2 + $0x60] sm:$0xff]
    %v44 = vld [vmem:[#allocation2 + $0x68] sm:$0xff]
    %v45 = vld [vmem:[#allocation2 + $0x70] sm:$0xff]
    %v46 = vld [vmem:[#allocation2 + $0x78] sm:$0xff]
    %v47 = vld [vmem:[#allocation2 + $0x80] sm:$0xff]
    %v48 = vld [vmem:[#allocation2 + $0x88] sm:$0xff]
    %v49 = vld [vmem:[#allocation2 + $0x90] sm:$0xff]
    %v50 = vld [vmem:[#allocation2 + $0x98] sm:$0xff]
    %v51 = vld [vmem:[#allocation2 + $0xa0] sm:$0xff]
    %v52 = vld [vmem:[#allocation2 + $0xa8] sm:$0xff]
    %v53 = vld [vmem:[#allocation2 + $0xb0] sm:$0xff]
    %v54 = vld [vmem:[#allocation2 + $0xb8] sm:$0xff]
    %v55 = vld [vmem:[#allocation2 + $0xc0] sm:$0xff]
    %v56 = vld [vmem:[#allocation2 + $0xc8] sm:$0xff]
    %v57 = vld [vmem:[#allocation2 + $0xd0] sm:$0xff]
    %v58 = vld [vmem:[#allocation2 + $0xd8] sm:$0xff]
    %v59 = vld [vmem:[#allocation2 + $0xe0] sm:$0xff]
    %v60 = vld [vmem:[#allocation2 + $0xe8] sm:$0xff]
    %v61 = vld [vmem:[#allocation2 + $0xf0] sm:$0xff]
    %v62 = vld [vmem:[#allocation2 + $0xf8] sm:$0xff]
    %v63 = vld [vmem:[#allocation2 + $0x100] sm:$0xff]
    %v64 = vld [vmem:[#allocation2 + $0x108] sm:$0xff]
    %v65 = vld [vmem:[#allocation2 + $0x110] sm:$0xff]
    %v66 = vld [vmem:[#allocation2 + $0x118] sm:$0xff]
    %v67 = vld [vmem:[#allocation2 + $0x120] sm:$0xff]
    %v68 = vld [vmem:[#allocation2 + $0x128] sm:$0xff]
    %v69 = vld [vmem:[#allocation2 + $0x130] sm:$0xff]
    %v70 = vld [vmem:[#allocation2 + $0x138] sm:$0xff]
    %v71 = vld [vmem:[#allocation2 + $0x140] sm:$0xff]
    %v72 = vld [vmem:[#allocation2 + $0x148] sm:$0xff]
    %v73 = vld [vmem:[#allocation2 + $0x150] sm:$0xff]
    %v74 = vld [vmem:[#allocation2 + $0x158] sm:$0xff]
    %v75 = vld [vmem:[#allocation2 + $0x160] sm:$0xff]
    %v76 = vld [vmem:[#allocation2 + $0x168] sm:$0xff]
    %v77 = vld [vmem:[#allocation2 + $0x170] sm:$0xff]
    %v78 = vld [vmem:[#allocation2 + $0x178] sm:$0xff]
    %v79 = vld [vmem:[#allocation2 + $0x180] sm:$0xff]
    %v80 = vld [vmem:[#allocation2 + $0x188] sm:$0xff]
    %v81 = vld [vmem:[#allocation2 + $0x190] sm:$0xff]
    %v82 = vld [vmem:[#allocation2 + $0x198] sm:$0xff]
    %v83 = vld [vmem:[#allocation2 + $0x1a0] sm:$0xff]
    %v84 = vld [vmem:[#allocation2 + $0x1a8] sm:$0xff]
    %v85 = vld [vmem:[#allocation2 + $0x1b0] sm:$0xff]
    %v86 = vld [vmem:[#allocation2 + $0x1b8] sm:$0xff]
    %v87 = vld [vmem:[#allocation2 + $0x1c0] sm:$0xff]
    %v88 = vld [vmem:[#allocation2 + $0x1c8] sm:$0xff]
    %v89 = vld [vmem:[#allocation2 + $0x1d0] sm:$0xff]
    %v90 = vld [vmem:[#allocation2 + $0x1d8] sm:$0xff]
    %v91 = vld [vmem:[#allocation2 + $0x1e0] sm:$0xff]
    %v92 = vld [vmem:[#allocation2 + $0x1e8] sm:$0xff]
    %v93 = vld [vmem:[#allocation2 + $0x1f0] sm:$0xff]
    %v94 = vld [vmem:[#allocation2 + $0x1f8] sm:$0xff]
    %v95 = vld [vmem:[#allocation2 + $0x200] sm:$0xff]
    %v96 = vld [vmem:[#allocation2 + $0x208] sm:$0xff]
    %v97 = vld [vmem:[#allocation2 + $0x210] sm:$0xff]
    %v98 = vld [vmem:[#allocation2 + $0x218] sm:$0xff]
    %v99 = vld [vmem:[#allocation2 + $0x220] sm:$0xff]
    %v100 = vld [vmem:[#allocation2 + $0x228] sm:$0xff]
    %v101 = vld [vmem:[#allocation2 + $0x230] sm:$0xff]
    %v102 = vld [vmem:[#allocation2 + $0x238] sm:$0xff]
    %v103 = vld [vmem:[#allocation2 + $0x240] sm:$0xff]
    %v104 = vld [vmem:[#allocation2 + $0x248] sm:$0xff]
    %v105 = vld [vmem:[#allocation2 + $0x250] sm:$0xff]
    %v106 = vld [vmem:[#allocation2 + $0x258] sm:$0xff]
    %v107 = vld [vmem:[#allocation2 + $0x260] sm:$0xff]
    %v108 = vld [vmem:[#allocation2 + $0x268] sm:$0xff]
    %v109 = vld [vmem:[#allocation2 + $0x270] sm:$0xff]
    %v110 = vld [vmem:[#allocation2 + $0x278] sm:$0xff]
    %v111 = vld [vmem:[#allocation2 + $0x280] sm:$0xff]
    %v112 = vld [vmem:[#allocation2 + $0x288] sm:$0xff]
    %v113 = vld [vmem:[#allocation2 + $0x290] sm:$0xff]
    %v114 = vld [vmem:[#allocation2 + $0x298] sm:$0xff]
    %v115 = vld [vmem:[#allocation2 + $0x2a0] sm:$0xff]
    %v116 = vld [vmem:[#allocation2 + $0x2a8] sm:$0xff]
    %v117 = vld [vmem:[#allocation2 + $0x2b0] sm:$0xff]
    %v118 = vld [vmem:[#allocation2 + $0x2b8] sm:$0xff]
    %v119 = vld [vmem:[#allocation2 + $0x2c0] sm:$0xff]
    %v120 = vld [vmem:[#allocation2 + $0x2c8] sm:$0xff]
    %v121 = vld [vmem:[#allocation2 + $0x2d0] sm:$0xff]
    %v122 = vld [vmem:[#allocation2 + $0x2d8] sm:$0xff]
    %v123 = vld [vmem:[#allocation2 + $0x2e0] sm:$0xff]
    %v124 = vld [vmem:[#allocation2 + $0x2e8] sm:$0xff]
    %v125 = vld [vmem:[#allocation2 + $0x2f0] sm:$0xff]
    %v126 = vld [vmem:[#allocation2 + $0x2f8] sm:$0xff]
    %v127 = vld [vmem:[%s2] sm:$0x1]
    %v129 = vlaneseq
    %v130 = vshrl.u32 %v129, 7
    %v131 = vsub.s32 0, %v130
    %v132 = vrot.slane %v127, %v131
    %v136 = vcombine.high %v29, %v29
    %v138 = vunpack.c.l.s4 1983009808
    %v139 = vunpack.c.0.s8 %v138
    %v140 = vlaneseq
    %v141 = vshrl.u32 %v140, 7
    %v142 = vsub.s32 %v139, %v141
    %v143 = vrot.slane %v29, %v142
    %v145 = vunpack.c.l.s4 1983009808
    %v146 = vunpack.c.0.s8 %v145
    %v147 = vlaneseq
    %v148 = vshrl.u32 %v147, 7
    %v149 = vsub.s32 %v146, %v148
    %v150 = vrot.slane %v136, %v149
    %v151 = vcombine.high %v143, %v143
    %v152 = vcombine.high %v150, %v150
    %v154 = vunpack.c.l.s4 1983009808
    %v155 = vunpack.c.0.s8 %v154
    %v156 = vlaneseq
    %v157 = vshrl.u32 %v156, 7
    %v158 = vsub.s32 %v155, %v157
    %v159 = vrot.slane %v30, %v158
    %v160 = vcombine.high %v159, %v159
    %167 = vmatprep.subr.mxu0 0.0
    %168 = vmatpush1.msra.mxu0 %v31
    %169 = vmatprep.subr.mxu0 0.0
    %170 = vmatpush1.msra.mxu0 %v32
    %171 = vmatprep.subr.mxu0 0.0
    %172 = vmatpush1.msra.mxu0 %v33
    %173 = vmatprep.subr.mxu0 0.0
    %174 = vmatpush1.msra.mxu0 %v34
    %175 = vmatprep.subr.mxu0 0.0
    %176 = vmatpush1.msra.mxu0 %v35
    %177 = vmatprep.subr.mxu0 0.0
    %178 = vmatpush1.msra.mxu0 %v36
    %179 = vmatprep.subr.mxu0 0.0
    %180 = vmatpush1.msra.mxu0 %v37
    %181 = vmatprep.subr.mxu0 0.0
    %182 = vmatpush1.msra.mxu0 %v38
    %183 = vmatprep.subr.mxu0 0.0
    %184 = vmatpush1.msra.mxu0 %v39
    %185 = vmatprep.subr.mxu0 0.0
    %186 = vmatpush1.msra.mxu0 %v40
    %187 = vmatprep.subr.mxu0 0.0
    %188 = vmatpush1.msra.mxu0 %v41
    %189 = vmatprep.subr.mxu0 0.0
    %190 = vmatpush1.msra.mxu0 %v42
    %191 = vmatprep.subr.mxu0 0.0
    %192 = vmatpush1.msra.mxu0 %v43
    %193 = vmatprep.subr.mxu0 0.0
    %194 = vmatpush1.msra.mxu0 %v44
    %195 = vmatprep.subr.mxu0 0.0
    %196 = vmatpush1.msra.mxu0 %v45
    %197 = vmatprep.subr.mxu0 0.0
    %198 = vmatpush1.msra.mxu0 %v46
    %199 = vmatprep.subr.mxu0 0.0
    %200 = vmatpush1.msra.mxu0 %v47
    %201 = vmatprep.subr.mxu0 0.0
    %202 = vmatpush1.msra.mxu0 %v48
    %203 = vmatprep.subr.mxu0 0.0
    %204 = vmatpush1.msra.mxu0 %v49
    %205 = vmatprep.subr.mxu0 0.0
    %206 = vmatpush1.msra.mxu0 %v50
    %207 = vmatprep.subr.mxu0 0.0
    %208 = vmatpush1.msra.mxu0 %v51
    %209 = vmatprep.subr.mxu0 0.0
    %210 = vmatpush1.msra.mxu0 %v52
    %211 = vmatprep.subr.mxu0 0.0
    %212 = vmatpush1.msra.mxu0 %v53
    %213 = vmatprep.subr.mxu0 0.0
    %214 = vmatpush1.msra.mxu0 %v54
    %215 = vmatprep.subr.mxu0 0.0
    %216 = vmatpush1.msra.mxu0 %v55
    %217 = vmatprep.subr.mxu0 0.0
    %218 = vmatpush1.msra.mxu0 %v56
    %219 = vmatprep.subr.mxu0 0.0
    %220 = vmatpush1.msra.mxu0 %v57
    %221 = vmatprep.subr.mxu0 0.0
    %222 = vmatpush1.msra.mxu0 %v58
    %223 = vmatprep.subr.mxu0 0.0
    %224 = vmatpush1.msra.mxu0 %v59
    %225 = vmatprep.subr.mxu0 0.0
    %226 = vmatpush1.msra.mxu0 %v60
    %227 = vmatprep.subr.mxu0 0.0
    %228 = vmatpush1.msra.mxu0 %v61
    %229 = vmatprep.subr.mxu0 0.0
    %230 = vmatpush1.msra.mxu0 %v62
    %231 = vmatprep.mubr.f32.mxu0 %v151
    %232 = vmatmul.mubr.f32.gmra.mrb[0].mxu0 %v143
    %v233 = vpop.f32.mrb[0].mxu0
    %v234 = vadd.f32 %v132, %v233
    %v235 = vpop.f32.mrb[0].mxu0
    %236 = vdwg.mxu0
    %237 = vmatprep.subr.mxu0 0.0
    %238 = vmatpush1.msra.mxu0 %v63
    %239 = vmatprep.subr.mxu0 0.0
    %240 = vmatpush1.msra.mxu0 %v64
    %241 = vmatprep.subr.mxu0 0.0
    %242 = vmatpush1.msra.mxu0 %v65
    %243 = vmatprep.subr.mxu0 0.0
    %244 = vmatpush1.msra.mxu0 %v66
    %245 = vmatprep.subr.mxu0 0.0
    %246 = vmatpush1.msra.mxu0 %v67
    %247 = vmatprep.subr.mxu0 0.0
    %248 = vmatpush1.msra.mxu0 %v68
    %249 = vmatprep.subr.mxu0 0.0
    %250 = vmatpush1.msra.mxu0 %v69
    %251 = vmatprep.subr.mxu0 0.0
    %252 = vmatpush1.msra.mxu0 %v70
    %253 = vmatprep.subr.mxu0 0.0
    %254 = vmatpush1.msra.mxu0 %v71
    %255 = vmatprep.subr.mxu0 0.0
    %256 = vmatpush1.msra.mxu0 %v72
    %257 = vmatprep.subr.mxu0 0.0
    %258 = vmatpush1.msra.mxu0 %v73
    %259 = vmatprep.subr.mxu0 0.0
    %260 = vmatpush1.msra.mxu0 %v74
    %261 = vmatprep.subr.mxu0 0.0
    %262 = vmatpush1.msra.mxu0 %v75
    %263 = vmatprep.subr.mxu0 0.0
    %264 = vmatpush1.msra.mxu0 %v76
    %265 = vmatprep.subr.mxu0 0.0
    %266 = vmatpush1.msra.mxu0 %v77
    %267 = vmatprep.subr.mxu0 0.0
    %268 = vmatpush1.msra.mxu0 %v78
    %269 = vmatprep.subr.mxu0 0.0
    %270 = vmatpush1.msra.mxu0 %v79
    %271 = vmatprep.subr.mxu0 0.0
    %272 = vmatpush1.msra.mxu0 %v80
    %273 = vmatprep.subr.mxu0 0.0
    %274 = vmatpush1.msra.mxu0 %v81
    %275 = vmatprep.subr.mxu0 0.0
    %276 = vmatpush1.msra.mxu0 %v82
    %277 = vmatprep.subr.mxu0 0.0
    %278 = vmatpush1.msra.mxu0 %v83
    %279 = vmatprep.subr.mxu0 0.0
    %280 = vmatpush1.msra.mxu0 %v84
    %281 = vmatprep.subr.mxu0 0.0
    %282 = vmatpush1.msra.mxu0 %v85
    %283 = vmatprep.subr.mxu0 0.0
    %284 = vmatpush1.msra.mxu0 %v86
    %285 = vmatprep.subr.mxu0 0.0
    %286 = vmatpush1.msra.mxu0 %v87
    %287 = vmatprep.subr.mxu0 0.0
    %288 = vmatpush1.msra.mxu0 %v88
    %289 = vmatprep.subr.mxu0 0.0
    %290 = vmatpush1.msra.mxu0 %v89
    %291 = vmatprep.subr.mxu0 0.0
    %292 = vmatpush1.msra.mxu0 %v90
    %293 = vmatprep.subr.mxu0 0.0
    %294 = vmatpush1.msra.mxu0 %v91
    %295 = vmatprep.subr.mxu0 0.0
    %296 = vmatpush1.msra.mxu0 %v92
    %297 = vmatprep.subr.mxu0 0.0
    %298 = vmatpush1.msra.mxu0 %v93
    %299 = vmatprep.subr.mxu0 0.0
    %300 = vmatpush1.msra.mxu0 %v94
    %301 = vmatprep.mubr.f32.mxu0 %v152
    %302 = vmatmul.mubr.f32.gmra.mrb[0].mxu0 %v150
    %v303 = vpop.f32.mrb[0].mxu0
    %v304 = vadd.f32 %v234, %v303
    %v305 = vpop.f32.mrb[0].mxu0
    %306 = vdwg.mxu0
    %307 = vmatprep.subr.mxu0 0.0
    %308 = vmatpush1.msra.mxu0 %v95
    %309 = vmatprep.subr.mxu0 0.0
    %310 = vmatpush1.msra.mxu0 %v96
    %311 = vmatprep.subr.mxu0 0.0
    %312 = vmatpush1.msra.mxu0 %v97
    %313 = vmatprep.subr.mxu0 0.0
    %314 = vmatpush1.msra.mxu0 %v98
    %315 = vmatprep.subr.mxu0 0.0
    %316 = vmatpush1.msra.mxu0 %v99
    %317 = vmatprep.subr.mxu0 0.0
    %318 = vmatpush1.msra.mxu0 %v100
    %319 = vmatprep.subr.mxu0 0.0
    %320 = vmatpush1.msra.mxu0 %v101
    %321 = vmatprep.subr.mxu0 0.0
    %322 = vmatpush1.msra.mxu0 %v102
    %323 = vmatprep.subr.mxu0 0.0
    %324 = vmatpush1.msra.mxu0 %v103
    %325 = vmatprep.subr.mxu0 0.0
    %326 = vmatpush1.msra.mxu0 %v104
    %327 = vmatprep.subr.mxu0 0.0
    %328 = vmatpush1.msra.mxu0 %v105
    %329 = vmatprep.subr.mxu0 0.0
    %330 = vmatpush1.msra.mxu0 %v106
    %331 = vmatprep.subr.mxu0 0.0
    %332 = vmatpush1.msra.mxu0 %v107
    %333 = vmatprep.subr.mxu0 0.0
    %334 = vmatpush1.msra.mxu0 %v108
    %335 = vmatprep.subr.mxu0 0.0
    %336 = vmatpush1.msra.mxu0 %v109
    %337 = vmatprep.subr.mxu0 0.0
    %338 = vmatpush1.msra.mxu0 %v110
    %339 = vmatprep.subr.mxu0 0.0
    %340 = vmatpush1.msra.mxu0 %v111
    %341 = vmatprep.subr.mxu0 0.0
    %342 = vmatpush1.msra.mxu0 %v112
    %343 = vmatprep.subr.mxu0 0.0
    %344 = vmatpush1.msra.mxu0 %v113
    %345 = vmatprep.subr.mxu0 0.0
    %346 = vmatpush1.msra.mxu0 %v114
    %347 = vmatprep.subr.mxu0 0.0
    %348 = vmatpush1.msra.mxu0 %v115
    %349 = vmatprep.subr.mxu0 0.0
    %350 = vmatpush1.msra.mxu0 %v116
    %351 = vmatprep.subr.mxu0 0.0
    %352 = vmatpush1.msra.mxu0 %v117
    %353 = vmatprep.subr.mxu0 0.0
    %354 = vmatpush1.msra.mxu0 %v118
    %355 = vmatprep.subr.mxu0 0.0
    %356 = vmatpush1.msra.mxu0 %v119
    %357 = vmatprep.subr.mxu0 0.0
    %358 = vmatpush1.msra.mxu0 %v120
    %359 = vmatprep.subr.mxu0 0.0
    %360 = vmatpush1.msra.mxu0 %v121
    %361 = vmatprep.subr.mxu0 0.0
    %362 = vmatpush1.msra.mxu0 %v122
    %363 = vmatprep.subr.mxu0 0.0
    %364 = vmatpush1.msra.mxu0 %v123
    %365 = vmatprep.subr.mxu0 0.0
    %366 = vmatpush1.msra.mxu0 %v124
    %367 = vmatprep.subr.mxu0 0.0
    %368 = vmatpush1.msra.mxu0 %v125
    %369 = vmatprep.subr.mxu0 0.0
    %370 = vmatpush1.msra.mxu0 %v126
    %371 = vmatprep.mubr.f32.mxu0 %v160
    %372 = vmatmul.mubr.f32.gmra.mrb[0].mxu0 %v159
    %v373 = vpop.f32.mrb[0].mxu0
    %v374 = vadd.f32 %v304, %v373
    %v375 = vpop.f32.mrb[0].mxu0
    %376 = vdwg.mxu0
    %377 = vst [vmem:[#allocation5] sm:$0x3] %v374
    // Predicated region
    $region18: #{matchlstm_forward.1} parent=1 // pred_check
      _
    $region19: #{matchlstm_forward.1} parent=1 // pred_check_branch
      %379 = sbr.rel (0) target = $region21
    $region20: #{matchlstm_forward.1} parent=1 // pred_region
      %s381 = ssub.s32 32, 32
      %382 = vsyncadd [#allocation4], %s381
      %s384 = sshll.u32 [#allocation5], 4
      %s385 = int_to_ptr.vmem [resolvable:$true] %s384
      %387 = dma.vmem_to_hbm [thread:$0]  %s385, 32, %s3, [#allocation4]
    $region21: #{matchlstm_forward.1} parent=1 // pred_fallthru
      _
    // Predicated region
    $region22: #{matchlstm_forward.1} parent=1 // pred_check
      _
    $region23: #{matchlstm_forward.1} parent=1 // pred_check_branch
      %389 = sbr.rel (0) target = $region25
    $region24: #{matchlstm_forward.1} parent=1 // pred_region
      %390 = dma.done [#allocation4], 32
    $region25: #{matchlstm_forward.1} parent=1 // pred_fallthru
      _
    %391 = vsyncpa [#allocation3], 1
    %392 = vsyncpa [#allocation4], 1

</llo_original>
